<compile_context>
chip_gen: v5e
topology: v5e:2x2
jax: 0.10.0
libtpu: 0.0.40
codegen_flags: <defaults>
</compile_context>

<pallas_src>
import functools

import jax
import jax.numpy as jnp
from jax.experimental import pallas as pl
from jax.experimental.pallas import tpu as pltpu

EPS = 1e-08


def _vec_layer_norm_kernel(x_ref, gamma_ref, beta_ref, o_ref, *, m):
    # x_ref block: (TB, M*D) -- many batch rows per grid step.
    xf = x_ref[...].astype(jnp.float32)

    # Per-row sum of squares over the flattened (M, D) dims; identical to the
    # PyTorch (-1, -2) keepdim reduction of each batch element.
    sum_sq = jnp.sum(xf * xf, axis=-1, keepdims=True)            # (TB, 1)

    # rsqrt runs on the EUP; gamma is folded into the per-row scale.
    inv = jax.lax.rsqrt((sum_sq + EPS) / m)                      # (TB, 1)
    scale = inv * gamma_ref[0]                                   # (TB, 1)

    # Zero mask applied before the +beta, exactly as in the PyTorch forward.
    mask = (xf != 0.0).astype(jnp.float32)

    o_ref[...] = (xf * scale * mask + beta_ref[0]).astype(o_ref.dtype)


def _round_up(x, n):
    return ((x + n - 1) // n) * n


def _vmem_budget():
    """Returns (per_buffer_cap_bytes, vmem_limit_bytes, physical_vmem_bytes)."""
    try:
        phys = int(pltpu.get_tpu_info().vmem_capacity_bytes)
    except Exception:           # conservative fallback if the query fails
        phys = 64 << 20
    if phys >= (128 << 20):     # v5e / v6e: 128 MiB physical VMEM
        return 14 << 20, 64 << 20, phys
    # v7x-class: 64 MiB per TensorCore -> leave headroom.
    return 8 << 20, 44 << 20, phys


def vec_layer_norm(vec, gamma, beta):
    """Pallas implementation of VecLayerNorm.forward.

    vec:   (B, M, D) float array (f32 or bf16)
    gamma: scalar parameter (shape (1,) like the torch Parameter)
    beta:  scalar parameter (shape (1,))
    """
    B, M, D = vec.shape
    N = M * D
    x2d = vec.reshape(B, N)
    row_bytes = N * jnp.dtype(vec.dtype).itemsize

    per_buf_cap, vmem_limit, vmem_phys = _vmem_budget()
    max_rows = (per_buf_cap // max(row_bytes, 1)) // 8 * 8       # multiple of 8

    if B <= 8:
        # Tiny batch: one block covering the full row dim (always legal).
        tb = B
    else:
        # Sublane-dense row count (multiple of 8), capped by the VMEM budget,
        # and at least 2 grid steps so v7x can shard across both TensorCores.
        two_step_rows = _round_up(pl.cdiv(B, 2), 8)
        tb = max(8, min(max(max_rows, 8), two_step_rows))

    grid = (pl.cdiv(B, tb),)

    # Make sure double-buffered in + out blocks actually fit; widen the limit
    # for the wide-row fallback instead of silently VMEM-OOMing at compile.
    block_bytes = tb * row_bytes
    needed = 4 * block_bytes + (2 << 20)
    vmem_limit = max(vmem_limit, needed)
    if vmem_limit > vmem_phys:
        raise ValueError(
            f"VecLayerNorm row of {row_bytes} bytes is too wide for a single "
            f"VMEM block on this TPU ({vmem_phys >> 20} MiB VMEM); an N-tiled "
            "two-pass kernel would be required for this shape.")

    gamma1 = jnp.asarray(gamma, jnp.float32).reshape(1)
    beta1 = jnp.asarray(beta, jnp.float32).reshape(1)

    out2d = pl.pallas_call(
        functools.partial(_vec_layer_norm_kernel, m=M),
        out_shape=jax.ShapeDtypeStruct((B, N), vec.dtype),
        grid_spec=pltpu.PrefetchScalarGridSpec(
            num_scalar_prefetch=0,
            grid=grid,
            in_specs=[
                pl.BlockSpec((tb, N), lambda i: (i, 0)),
                pl.BlockSpec(memory_space=pltpu.MemorySpace.SMEM),
                pl.BlockSpec(memory_space=pltpu.MemorySpace.SMEM),
            ],
            out_specs=pl.BlockSpec((tb, N), lambda i: (i, 0)),
        ),
        compiler_params=pltpu.CompilerParams(
            dimension_semantics=("parallel",),
            vmem_limit_bytes=vmem_limit,
        ),
    )(x2d, gamma1, beta1)

    return out2d.reshape(B, M, D)


def vec_layer_norm_ref(vec, gamma, beta):
    """Pure-JAX (f32) reference mirroring the PyTorch forward exactly."""
    vf = vec.astype(jnp.float32)
    non_zero_mask = (vec != 0).astype(jnp.float32)
    sum_sq = (vf ** 2).sum(axis=-1, keepdims=True).sum(axis=-2, keepdims=True)
    normed = vf / jnp.sqrt((sum_sq + EPS) / vec.shape[-2]) * non_zero_mask
    return normed * jnp.asarray(gamma, jnp.float32) + jnp.asarray(beta, jnp.float32)


if __name__ == "__main__":
    # Deterministic parameters, matching nn.Parameter(torch.ones(1)/zeros(1)).
    gamma = jnp.ones((1,), jnp.float32)
    beta = jnp.zeros((1,), jnp.float32)

    M, D = 3, 32

    # Test 1: small batch -> single-block (B <= 8) path.
    B1 = 2
    v1 = jax.random.normal(jax.random.PRNGKey(0), (B1, M, D), dtype=jnp.float32)
    v1 = v1 * (jax.random.uniform(jax.random.PRNGKey(1), (B1, M, D)) > 0.2)
    o1 = jax.block_until_ready(vec_layer_norm(v1, gamma, beta))
    r1 = vec_layer_norm_ref(v1, gamma, beta)
    assert jnp.allclose(o1, r1, atol=1e-5, rtol=1e-5), "mismatch (small batch)"

    # Test 2: B=20 -> two parallel row blocks with a ragged last block
    # (exercises Pallas' masked partial-block writeback; no wrapper pad/slice).
    B2 = 20
    v2 = jax.random.normal(jax.random.PRNGKey(2), (B2, M, D), dtype=jnp.float32)
    v2 = v2 * (jax.random.uniform(jax.random.PRNGKey(3), (B2, M, D)) > 0.2)
    o2 = jax.block_until_ready(vec_layer_norm(v2, gamma, beta))
    r2 = vec_layer_norm_ref(v2, gamma, beta)
    assert jnp.allclose(o2, r2, atol=1e-5, rtol=1e-5), "mismatch (ragged multi-block)"

    # Test 3: bf16 I/O (halves HBM traffic; kernel reduces in f32 internally).
    v3 = v2.astype(jnp.bfloat16)
    o3 = jax.block_until_ready(vec_layer_norm(v3, gamma, beta))
    r3 = vec_layer_norm_ref(v3, gamma, beta)
    assert o3.dtype == jnp.bfloat16
    assert jnp.allclose(o3.astype(jnp.float32), r3, atol=3e-2, rtol=3e-2), \
        "mismatch (bf16)"

    print("KERNEL_OK")
</pallas_src>

<mosaic_0001>
module attributes {stable_mosaic.version = 11 : i64} {
  func.func @_vec_layer_norm_kernel(%arg0: i32, %arg1: memref<2x96xf32, #tpu.memory_space<vmem>>, %arg2: memref<1xf32, #tpu.memory_space<smem>>, %arg3: memref<1xf32, #tpu.memory_space<smem>>, %arg4: memref<2x96xf32, #tpu.memory_space<vmem>>) attributes {dimension_semantics = [#tpu.dimension_semantics<parallel>], iteration_bounds = array<i64: 1>, scalar_prefetch = 0 : i64, scratch_operands = 0 : i64, tpu.core_type = #tpu.core_type<tc>, window_params = [{transform_indices = @transform_0, window_bounds = array<i64: 2, 96>}, {transform_indices = @transform_1, window_bounds = array<i64: 1>}, {transform_indices = @transform_2, window_bounds = array<i64: 1>}, {transform_indices = @transform_3, window_bounds = array<i64: 2, 96>}]} {
    %c0 = arith.constant 0 : index
    %c0_0 = arith.constant 0 : index
    %0 = vector.load %arg1[%c0, %c0_0] : memref<2x96xf32, #tpu.memory_space<vmem>>, vector<2x96xf32>
    %1 = arith.mulf %0, %0 : vector<2x96xf32>
    %cst = arith.constant dense<0.000000e+00> : vector<2xf32>
    %2 = vector.multi_reduction <add>, %1, %cst [1] : vector<2x96xf32> to vector<2xf32>
    %3 = vector.shape_cast %2 : vector<2xf32> to vector<2x1xf32>
    %cst_1 = arith.constant 9.99999993E-9 : f32
    %4 = vector.broadcast %cst_1 : f32 to vector<2x1xf32>
    %5 = arith.addf %3, %4 : vector<2x1xf32>
    %cst_2 = arith.constant 3.000000e+00 : f32
    %6 = vector.broadcast %cst_2 : f32 to vector<2x1xf32>
    %7 = arith.divf %5, %6 : vector<2x1xf32>
    %8 = math.rsqrt %7 : vector<2x1xf32>
    %c0_3 = arith.constant 0 : index
    %9 = memref.load %arg2[%c0_3] : memref<1xf32, #tpu.memory_space<smem>>
    %10 = vector.broadcast %9 : f32 to vector<2x1xf32>
    %11 = arith.mulf %8, %10 : vector<2x1xf32>
    %cst_4 = arith.constant 0.000000e+00 : f32
    %12 = vector.broadcast %cst_4 : f32 to vector<2x96xf32>
    %13 = arith.cmpf one, %0, %12 : vector<2x96xf32>
    %14 = arith.extui %13 : vector<2x96xi1> to vector<2x96xi32>
    %15 = arith.sitofp %14 : vector<2x96xi32> to vector<2x96xf32>
    %16 = vector.broadcast %11 : vector<2x1xf32> to vector<2x96xf32>
    %17 = arith.mulf %0, %16 : vector<2x96xf32>
    %18 = arith.mulf %17, %15 : vector<2x96xf32>
    %c0_5 = arith.constant 0 : index
    %19 = memref.load %arg3[%c0_5] : memref<1xf32, #tpu.memory_space<smem>>
    %20 = vector.broadcast %19 : f32 to vector<2x96xf32>
    %21 = arith.addf %18, %20 : vector<2x96xf32>
    %c0_6 = arith.constant 0 : index
    %c0_7 = arith.constant 0 : index
    %22 = vector.load %arg4[%c0_6, %c0_7] : memref<2x96xf32, #tpu.memory_space<vmem>>, vector<2x96xf32>
    tpu.vector_store %arg4[%c0_6, %c0_7], %21 {strides = array<i32>} : memref<2x96xf32, #tpu.memory_space<vmem>>, vector<2x96xf32>,
    return
  }
  func.func @transform_0(%arg0: i32) -> (i32, i32) {
    %c0_i32 = arith.constant 0 : i32
    %c0_i32_0 = arith.constant 0 : i32
    return %arg0, %c0_i32 : i32, i32
  }
  func.func @transform_1(%arg0: i32) -> i32 {
    %c0_i32 = arith.constant 0 : i32
    %c0_i32_0 = arith.constant 0 : i32
    return %c0_i32 : i32
  }
  func.func @transform_2(%arg0: i32) -> i32 {
    %c0_i32 = arith.constant 0 : i32
    %c0_i32_0 = arith.constant 0 : i32
    return %c0_i32 : i32
  }
  func.func @transform_3(%arg0: i32) -> (i32, i32) {
    %c0_i32 = arith.constant 0 : i32
    %c0_i32_0 = arith.constant 0 : i32
    return %arg0, %c0_i32 : i32, i32
  }
}

</mosaic_0001>

<llo_original>
// kernel: tpu_custom_call.1
$region0: #{tpu_custom_call.1}
  #allocation0 [shape = 'u32[]', space=smem, size = 0x4, offset = 0x4, fixed_abs, tag = 'smem constant byte address 0x4 - core index']
  #allocation1 [shape = 'u32[72,128]{1,0:T(1,128)}', space=vmem, size = 0x9000, scoped, tag = 'internal scratch']
  #allocation2 [shape = 'f32[1]{0:T(128)S(6)}', space=smem, size = 0x200, scoped, tag = 'scoped memory for tpu_custom_call.1']
  #allocation3 [shape = 'f32[1]{0:T(128)S(6)}', space=smem, size = 0x200, scoped, tag = 'scoped memory for tpu_custom_call.1']
  %s0 = inlined_call_operand.vmem [shape: f32[2,96], index: 0, kind: input, shape index: {}]
  %s1 = inlined_call_operand.<no memory space> [shape: f32[1], index: 1, kind: input, shape index: {}]
  %s2 = inlined_call_operand.<no memory space> [shape: f32[1], index: 2, kind: input, shape index: {}]
  %s3 = inlined_call_operand.hbm [shape: f32[2,96], index: 3, kind: output, shape index: {}]
  %s4 = sld [smem:[#allocation0]]
  $region22: #{tpu_custom_call.1} parent=0
    _
  %s6 = ssub.s32 1, %s4
  %s7 = scalar_select 0, %s6, %s4
  %8 = sst [smem:[#allocation2]] %s1
  %9 = sst [smem:[#allocation3]] %s2
  $region1: #{tpu_custom_call.1} parent=0
    #allocation4 [shape = 'u8[1024]{0}', space=vmem, size = 0x400, scoped, tag = 'output window, operand 0, single buffered']
    #allocation5 [shape = 's32[1]{0}', space=sflag, size = 0x4, scoped, tag = 'scoped memory for tpu_custom_call.1']
    %10 = vsyncpa [#allocation5], 0
    // Predicated region
    $region2: #{tpu_custom_call.1} parent=1 // pred_check
      _
    $region3: #{tpu_custom_call.1} parent=1 // pred_check_branch
      %12 = sbr.rel (0) target = $region5
    $region4: #{tpu_custom_call.1} parent=1 // pred_region
      _
    $region5: #{tpu_custom_call.1} parent=1 // pred_fallthru
      _
    // Predicated region
    $region6: #{tpu_custom_call.1} parent=1 // pred_check
      _
    $region7: #{tpu_custom_call.1} parent=1 // pred_check_branch
      %14 = sbr.rel (0) target = $region9
    $region8: #{tpu_custom_call.1} parent=1 // pred_region
      _
    $region9: #{tpu_custom_call.1} parent=1 // pred_fallthru
      _
    // Predicated region
    $region10: #{tpu_custom_call.1} parent=1 // pred_check
      _
    $region11: #{tpu_custom_call.1} parent=1 // pred_check_branch
      %16 = sbr.rel (0) target = $region13
    $region12: #{tpu_custom_call.1} parent=1 // pred_region
      _
    $region13: #{tpu_custom_call.1} parent=1 // pred_fallthru
      _
    %v17 = vld [vmem:[%s0] sm:$0x3]
    %v18 = vmul.f32 %v17, %v17
    %vm19 = vcmask 779264
    %v20 = vsel %vm19, %v18, 0.0
    %21 = vadd.xlane.f32.xlu0 %v20
    %v22 = vpop.xlane.xlu0 %21
    %v23 = vadd.f32 %v22, 1e-08
    %v24 = vrcp.pop 3.0
    %v25 = vmul.f32 3.0, %v24
    %v26 = vsub.f32 1.0, %v25
    %v27 = vmul.f32 %v24, %v26
    %v28 = vadd.f32 %v24, %v27
    %vm29 = vweird.f32 %v24
    %v30 = vsel %vm29, %v24, %v28
    %v31 = vmul.f32 %v23, %v30
    %v32 = vrsqrt.pop %v31
    %v33 = vmul.f32 %v32, %v31
    %v34 = vmul.f32 %v33, %v32
    %v35 = vmul.f32 0.5, %v34
    %v36 = vsub.f32 1.5, %v35
    %v37 = vmul.f32 %v32, %v36
    %vm38 = vweird.f32 %v31
    %vm39 = vweird.f32 %v32
    %vm40 = vmor %vm38, %vm39
    %v41 = vsel %vm40, %v32, %v37
    %s42 = sld [smem:[#allocation2]]
    %v43 = vstv %s42
    %v44 = vmul.f32 %v41, %v43
    %vm45 = vcmp.ne.f32.partialorder %v17, 0.0
    %v46 = vsel %vm45, 1, 0
    %v47 = vcvt.s32.f32 %v46
    %v48 = vmul.f32 %v17, %v44
    %v49 = vmul.f32 %v48, %v47
    %s50 = sld [smem:[#allocation3]]
    %v51 = vstv %s50
    %v52 = vadd.f32 %v49, %v51
    %53 = vst.msk [vmem:[#allocation4] sm:$0x3] %vm19, %v52
    // Predicated region
    $region14: #{tpu_custom_call.1} parent=1 // pred_check
      _
    $region15: #{tpu_custom_call.1} parent=1 // pred_check_branch
      %55 = sbr.rel (0) target = $region17
    $region16: #{tpu_custom_call.1} parent=1 // pred_region
      %57 = vsyncadd [#allocation5], 0
      %s59 = sshll.u32 [#allocation4], 4
      %s60 = int_to_ptr.vmem [resolvable:$true] %s59
      %s61 = sshll.u32 %s3, 4
      %s62 = int_to_ptr.hbm [resolvable:$true] %s61
      %64 = dma.vmem_to_hbm [thread:$0]  %s60, 32, %s62, [#allocation5]
    $region17: #{tpu_custom_call.1} parent=1 // pred_fallthru
      _
    // Predicated region
    $region18: #{tpu_custom_call.1} parent=1 // pred_check
      _
    $region19: #{tpu_custom_call.1} parent=1 // pred_check_branch
      %66 = sbr.rel (0) target = $region21
    $region20: #{tpu_custom_call.1} parent=1 // pred_region
      %68 = dma.done [#allocation5], 32
    $region21: #{tpu_custom_call.1} parent=1 // pred_fallthru
      _
    %69 = vsyncpa [#allocation5], 1

</llo_original>
